<compile_context>
chip_gen: v5e
topology: v5e:2x2
jax: 0.10.0
libtpu: 0.0.40
codegen_flags: <defaults>
</compile_context>

<pallas_src>
import jax
import jax.numpy as jnp
from jax.experimental import pallas as pl
from jax.experimental.pallas import tpu as pltpu


def _round_up(n, m):
    return ((n + m - 1) // m) * m


def _vmem_budget_bytes():
    """~85% of physical per-core VMEM (headroom for Mosaic internal scratch).

    v5e/v6e: 128 MiB -> ~108 MiB budget; v7x: 64 MiB -> ~54 MiB budget.
    """
    try:
        cap = int(pltpu.get_tpu_info().vmem_capacity_bytes)
    except Exception:
        cap = 64 * 1024 * 1024  # conservative fallback: assume v7x-sized VMEM
    return int(cap * 0.85)


# ---------------------------------------------------------------------------
# Kernels
# ---------------------------------------------------------------------------
def _resident_kernel(x_ref, w1_ref, b1_ref, w2_ref, b2_ref, o_ref, h_ref):
    # fc1 on the MXU, f32 accumulation.
    h = jnp.dot(x_ref[...], w1_ref[...], preferred_element_type=jnp.float32)
    # Bias + ReLU in f32; store to VMEM scratch in the compute dtype
    # (bf16 in mixed precision) -> halves the h store/load traffic.
    h_ref[...] = jnp.maximum(h + b1_ref[...], 0.0).astype(h_ref.dtype)
    # fc2 on the MXU, f32 accumulation.
    y = jnp.dot(h_ref[...], w2_ref[...], preferred_element_type=jnp.float32)
    o_ref[...] = (y + b2_ref[...]).astype(o_ref.dtype)


def _ktiled_kernel(x_ref, w1_ref, b1_ref, w2_ref, b2_ref, o_ref, acc_ref):
    # Grid axis 1 tiles Din: h columns (fc1 outputs) == fc2 contraction rows,
    # so each step computes a full h tile and accumulates its fc2 contribution.
    k = pl.program_id(1)

    @pl.when(k == 0)
    def _():
        acc_ref[...] = jnp.zeros_like(acc_ref)

    h = jnp.dot(x_ref[...], w1_ref[...], preferred_element_type=jnp.float32)
    h = jnp.maximum(h + b1_ref[...], 0.0).astype(w2_ref.dtype)
    acc_ref[...] += jnp.dot(h, w2_ref[...], preferred_element_type=jnp.float32)

    @pl.when(k == pl.num_programs(1) - 1)
    def _():
        o_ref[...] = (acc_ref[...] + b2_ref[...]).astype(o_ref.dtype)


# ---------------------------------------------------------------------------
# Wrapper
# ---------------------------------------------------------------------------
def make_projection_head(w1, b1, w2, b2, *, compute_dtype=jnp.bfloat16,
                         batch_tile=256, force_ktiled=False):
    """Build an apply(x) computing relu(x @ w1 + b1) @ w2 + b2.

    Weights are padded to lane-aligned shapes and cast to compute_dtype ONCE
    here (not per call). batch_tile: 256 default (sweep 256/512 on v6e,
    keep 128-256 on v5e).
    """
    din, dout = w1.shape[0], w2.shape[1]
    assert w1.shape == (din, din) and w2.shape == (din, dout)
    assert b1.shape == (din,) and b2.shape == (dout,)

    cdt = jnp.dtype(compute_dtype) if compute_dtype is not None else jnp.dtype(w1.dtype)
    din_p = _round_up(din, 128)
    dout_p = _round_up(dout, 128)

    # Zero-padding is exact: padded x cols / W1 rows contribute 0, padded h
    # cols are relu(0 + 0) = 0 and hit zero W2 rows, padded batch rows are
    # sliced off below.
    w1_p = jnp.pad(w1.astype(cdt), ((0, din_p - din), (0, din_p - din)))
    w2_p = jnp.pad(w2.astype(cdt), ((0, din_p - din), (0, dout_p - dout)))
    b1_p = jnp.pad(b1.astype(jnp.float32), (0, din_p - din)).reshape(1, din_p)
    b2_p = jnp.pad(b2.astype(jnp.float32), (0, dout_p - dout)).reshape(1, dout_p)

    w_isz = cdt.itemsize
    budget = _vmem_budget_bytes()
    # Single-buffered resident weight footprint (pl.Buffered(1) below).
    weight_bytes = (din_p * din_p + din_p * dout_p) * w_isz + (din_p + dout_p) * 4
    use_ktiled = force_ktiled or (weight_bytes > budget // 2)

    if use_ktiled:
        # Largest power-of-two lane-aligned K tile dividing din_p that still
        # leaves room for double-buffered W1/W2 tiles.
        tk = 512 if din_p % 512 == 0 else (256 if din_p % 256 == 0 else 128)
        while tk > 128 and 2 * (din_p * tk + tk * dout_p) * w_isz > budget // 2:
            tk //= 2
    else:
        tk = None

    def apply(x):
        B, din_in = x.shape
        assert din_in == din
        out_dtype = x.dtype
        o_isz = jnp.dtype(out_dtype).itemsize

        # Batch tile: >= 8 sublanes; keep >=2 grid steps when the batch allows
        # so both v7x TensorCores get work under dimension_semantics=parallel.
        b8 = _round_up(max(B, 1), 8)
        if b8 >= 2 * batch_tile:
            tb = batch_tile
        elif b8 >= 16:
            tb = _round_up((b8 + 1) // 2, 8)
        else:
            tb = b8
        b_p = _round_up(b8, tb)

        x_c = x.astype(cdt)
        x_p = x_c
        if (b_p, din_p) != (B, din):
            x_p = jnp.pad(x_c, ((0, b_p - B), (0, din_p - din)))

        if not use_ktiled:
            resident = pl.Buffered(buffer_count=1)  # constant blocks: no double buffer
            vmem_est = (
                weight_bytes                      # W1, W2, b1, b2 (single-buffered)
                + 2 * tb * din_p * w_isz          # x tile (double-buffered)
                + 2 * tb * dout_p * o_isz         # out tile (double-buffered)
                + tb * din_p * w_isz              # h scratch (compute dtype)
            )
            vmem_limit = int(min(max(2 * vmem_est, 32 * 1024 * 1024), budget))
            out_p = pl.pallas_call(
                _resident_kernel,
                out_shape=jax.ShapeDtypeStruct((b_p, dout_p), out_dtype),
                grid=(b_p // tb,),
                in_specs=[
                    pl.BlockSpec((tb, din_p), lambda i: (i, 0)),       # x streamed
                    pl.BlockSpec((din_p, din_p), lambda i: (0, 0),
                                 pipeline_mode=resident),              # W1 resident
                    pl.BlockSpec((1, din_p), lambda i: (0, 0),
                                 pipeline_mode=resident),              # b1 resident
                    pl.BlockSpec((din_p, dout_p), lambda i: (0, 0),
                                 pipeline_mode=resident),              # W2 resident
                    pl.BlockSpec((1, dout_p), lambda i: (0, 0),
                                 pipeline_mode=resident),              # b2 resident
                ],
                out_specs=pl.BlockSpec((tb, dout_p), lambda i: (i, 0)),
                scratch_shapes=[pltpu.VMEM((tb, din_p), cdt)],
                compiler_params=pltpu.CompilerParams(
                    dimension_semantics=("parallel",),
                    vmem_limit_bytes=vmem_limit,
                ),
            )(x_p, w1_p, b1_p, w2_p, b2_p)
        else:
            nk = din_p // tk
            vmem_est = (
                2 * tb * din_p * w_isz                      # full-row x tile
                + 2 * (din_p * tk + tk * dout_p) * w_isz    # W1/W2 K tiles
                + 2 * (tk + dout_p) * 4                     # bias tiles
                + 2 * tb * dout_p * o_isz                   # out tile
                + tb * dout_p * 4                           # f32 accumulator
            )
            vmem_limit = int(min(max(2 * vmem_est, 32 * 1024 * 1024), budget))
            out_p = pl.pallas_call(
                _ktiled_kernel,
                out_shape=jax.ShapeDtypeStruct((b_p, dout_p), out_dtype),
                grid=(b_p // tb, nk),
                in_specs=[
                    pl.BlockSpec((tb, din_p), lambda i, k: (i, 0)),   # x (resident per i)
                    pl.BlockSpec((din_p, tk), lambda i, k: (0, k)),   # W1 K-tile
                    pl.BlockSpec((1, tk), lambda i, k: (0, k)),       # b1 K-tile
                    pl.BlockSpec((tk, dout_p), lambda i, k: (k, 0)),  # W2 K-tile
                    pl.BlockSpec((1, dout_p), lambda i, k: (0, 0)),   # b2
                ],
                out_specs=pl.BlockSpec((tb, dout_p), lambda i, k: (i, 0)),
                scratch_shapes=[pltpu.VMEM((tb, dout_p), jnp.float32)],
                compiler_params=pltpu.CompilerParams(
                    dimension_semantics=("parallel", "arbitrary"),
                    vmem_limit_bytes=vmem_limit,
                ),
            )(x_p, w1_p, b1_p, w2_p, b2_p)

        return out_p[:B, :dout]

    return apply


def projection_head(x, w1, b1, w2, b2, *, compute_dtype=jnp.bfloat16,
                    batch_tile=256, force_ktiled=False):
    """One-shot convenience wrapper. For repeated calls with the same weights,
    use make_projection_head() so weight padding / casting happens once."""
    apply = make_projection_head(w1, b1, w2, b2, compute_dtype=compute_dtype,
                                 batch_tile=batch_tile, force_ktiled=force_ktiled)
    return apply(x)


def init_params(key, in_dim, out_dim, dtype=jnp.float32):
    """Deterministic init mimicking nn.Linear default (uniform +/- 1/sqrt(fan_in))."""
    k1, k2, k3, k4 = jax.random.split(key, 4)
    bound1 = 1.0 / jnp.sqrt(in_dim)
    # PyTorch weight is (out, in); we store transposed (in, out) for x @ W.
    w1 = jax.random.uniform(k1, (in_dim, in_dim), dtype, -bound1, bound1)
    b1 = jax.random.uniform(k2, (in_dim,), dtype, -bound1, bound1)
    bound2 = 1.0 / jnp.sqrt(in_dim)
    w2 = jax.random.uniform(k3, (in_dim, out_dim), dtype, -bound2, bound2)
    b2 = jax.random.uniform(k4, (out_dim,), dtype, -bound2, bound2)
    return w1, b1, w2, b2


if __name__ == "__main__":
    key = jax.random.PRNGKey(0)
    kx, kp = jax.random.split(key)

    batch, in_dim, out_dim = 8, 32, 16
    x = jax.random.normal(kx, (batch, in_dim), jnp.float32)
    w1, b1, w2, b2 = init_params(kp, in_dim, out_dim)

    # Plain-JAX reference (same math as the PyTorch forward).
    ref = jnp.maximum(x @ w1 + b1, 0.0) @ w2 + b2

    # 1) Full-f32 resident-weight path: exact-tolerance check.
    out_f32 = jax.block_until_ready(
        projection_head(x, w1, b1, w2, b2, compute_dtype=None))
    assert out_f32.shape == (batch, out_dim)
    assert jnp.allclose(out_f32, ref, atol=2e-5, rtol=2e-5)

    # 2) Production default (bf16 MXU inputs, f32 accumulation): loose tolerance.
    out_bf16 = jax.block_until_ready(projection_head(x, w1, b1, w2, b2))
    assert out_bf16.shape == (batch, out_dim)
    assert jnp.allclose(out_bf16, ref, atol=5e-2, rtol=5e-2)

    # 3) K-tiled fallback (auto-selected when W1+W2 outgrow ~half of VMEM);
    #    forced here at small shapes so both paths are exercised.
    out_kt = jax.block_until_ready(
        projection_head(x, w1, b1, w2, b2, compute_dtype=None, force_ktiled=True))
    assert jnp.allclose(out_kt, ref, atol=2e-5, rtol=2e-5)

    print("KERNEL_OK")
</pallas_src>

<mosaic_0001>
module attributes {stable_mosaic.version = 11 : i64} {
  func.func @_resident_kernel(%arg0: i32, %arg1: memref<8x128xf32, #tpu.memory_space<vmem>>, %arg2: memref<128x128xf32, #tpu.memory_space<vmem>>, %arg3: memref<1x128xf32, #tpu.memory_space<vmem>>, %arg4: memref<128x128xf32, #tpu.memory_space<vmem>>, %arg5: memref<1x128xf32, #tpu.memory_space<vmem>>, %arg6: memref<8x128xf32, #tpu.memory_space<vmem>>, %arg7: memref<8x128xf32, #tpu.memory_space<vmem>>) attributes {dimension_semantics = [#tpu.dimension_semantics<parallel>], iteration_bounds = array<i64: 1>, scalar_prefetch = 0 : i64, scratch_operands = 1 : i64, tpu.core_type = #tpu.core_type<tc>, window_params = [{transform_indices = @transform_0, window_bounds = array<i64: 8, 128>}, {pipeline_mode = #tpu.pipeline_mode<synchronous>, transform_indices = @transform_1, window_bounds = array<i64: 128, 128>}, {pipeline_mode = #tpu.pipeline_mode<synchronous>, transform_indices = @transform_2, window_bounds = array<i64: 1, 128>}, {pipeline_mode = #tpu.pipeline_mode<synchronous>, transform_indices = @transform_3, window_bounds = array<i64: 128, 128>}, {pipeline_mode = #tpu.pipeline_mode<synchronous>, transform_indices = @transform_4, window_bounds = array<i64: 1, 128>}, {transform_indices = @transform_5, window_bounds = array<i64: 8, 128>}]} {
    %c0 = arith.constant 0 : index
    %c0_0 = arith.constant 0 : index
    %0 = vector.load %arg1[%c0, %c0_0] : memref<8x128xf32, #tpu.memory_space<vmem>>, vector<8x128xf32>
    %c0_1 = arith.constant 0 : index
    %c0_2 = arith.constant 0 : index
    %1 = vector.load %arg2[%c0_1, %c0_2] : memref<128x128xf32, #tpu.memory_space<vmem>>, vector<128x128xf32>
    %cst = arith.constant dense<0.000000e+00> : vector<8x128xf32>
    %2 = tpu.matmul %0, %1, %cst {dimension_numbers = #tpu.dot_dimension_numbers<[1], [0], [0], [1], [0, 0, 1, 1], [], []>} : vector<8x128xf32>, vector<128x128xf32>, vector<8x128xf32> -> vector<8x128xf32>
    %c0_3 = arith.constant 0 : index
    %c0_4 = arith.constant 0 : index
    %3 = vector.load %arg3[%c0_3, %c0_4] : memref<1x128xf32, #tpu.memory_space<vmem>>, vector<1x128xf32>
    %4 = vector.broadcast %3 : vector<1x128xf32> to vector<8x128xf32>
    %5 = arith.addf %2, %4 : vector<8x128xf32>
    %cst_5 = arith.constant 0.000000e+00 : f32
    %6 = vector.broadcast %cst_5 : f32 to vector<8x128xf32>
    %7 = arith.maximumf %5, %6 : vector<8x128xf32>
    %c0_6 = arith.constant 0 : index
    %c0_7 = arith.constant 0 : index
    %8 = vector.load %arg7[%c0_6, %c0_7] : memref<8x128xf32, #tpu.memory_space<vmem>>, vector<8x128xf32>
    tpu.vector_store %arg7[%c0_6, %c0_7], %7 {strides = array<i32>} : memref<8x128xf32, #tpu.memory_space<vmem>>, vector<8x128xf32>,
    %c0_8 = arith.constant 0 : index
    %c0_9 = arith.constant 0 : index
    %9 = vector.load %arg7[%c0_8, %c0_9] : memref<8x128xf32, #tpu.memory_space<vmem>>, vector<8x128xf32>
    %c0_10 = arith.constant 0 : index
    %c0_11 = arith.constant 0 : index
    %10 = vector.load %arg4[%c0_10, %c0_11] : memref<128x128xf32, #tpu.memory_space<vmem>>, vector<128x128xf32>
    %cst_12 = arith.constant dense<0.000000e+00> : vector<8x128xf32>
    %11 = tpu.matmul %9, %10, %cst_12 {dimension_numbers = #tpu.dot_dimension_numbers<[1], [0], [0], [1], [0, 0, 1, 1], [], []>} : vector<8x128xf32>, vector<128x128xf32>, vector<8x128xf32> -> vector<8x128xf32>
    %c0_13 = arith.constant 0 : index
    %c0_14 = arith.constant 0 : index
    %12 = vector.load %arg5[%c0_13, %c0_14] : memref<1x128xf32, #tpu.memory_space<vmem>>, vector<1x128xf32>
    %13 = vector.broadcast %12 : vector<1x128xf32> to vector<8x128xf32>
    %14 = arith.addf %11, %13 : vector<8x128xf32>
    %c0_15 = arith.constant 0 : index
    %c0_16 = arith.constant 0 : index
    %15 = vector.load %arg6[%c0_15, %c0_16] : memref<8x128xf32, #tpu.memory_space<vmem>>, vector<8x128xf32>
    tpu.vector_store %arg6[%c0_15, %c0_16], %14 {strides = array<i32>} : memref<8x128xf32, #tpu.memory_space<vmem>>, vector<8x128xf32>,
    return
  }
  func.func @transform_0(%arg0: i32) -> (i32, i32) {
    %c0_i32 = arith.constant 0 : i32
    %c0_i32_0 = arith.constant 0 : i32
    return %arg0, %c0_i32 : i32, i32
  }
  func.func @transform_1(%arg0: i32) -> (i32, i32) {
    %c0_i32 = arith.constant 0 : i32
    %c0_i32_0 = arith.constant 0 : i32
    %c0_i32_1 = arith.constant 0 : i32
    return %c0_i32, %c0_i32_0 : i32, i32
  }
  func.func @transform_2(%arg0: i32) -> (i32, i32) {
    %c0_i32 = arith.constant 0 : i32
    %c0_i32_0 = arith.constant 0 : i32
    %c0_i32_1 = arith.constant 0 : i32
    return %c0_i32, %c0_i32_0 : i32, i32
  }
  func.func @transform_3(%arg0: i32) -> (i32, i32) {
    %c0_i32 = arith.constant 0 : i32
    %c0_i32_0 = arith.constant 0 : i32
    %c0_i32_1 = arith.constant 0 : i32
    return %c0_i32, %c0_i32_0 : i32, i32
  }
  func.func @transform_4(%arg0: i32) -> (i32, i32) {
    %c0_i32 = arith.constant 0 : i32
    %c0_i32_0 = arith.constant 0 : i32
    %c0_i32_1 = arith.constant 0 : i32
    return %c0_i32, %c0_i32_0 : i32, i32
  }
  func.func @transform_5(%arg0: i32) -> (i32, i32) {
    %c0_i32 = arith.constant 0 : i32
    %c0_i32_0 = arith.constant 0 : i32
    return %arg0, %c0_i32 : i32, i32
  }
}

</mosaic_0001>

<llo_original>
// kernel: tpu_custom_call.1
$region0: #{tpu_custom_call.1}
  #allocation0 [shape = 'u32[]', space=smem, size = 0x4, offset = 0x4, fixed_abs, tag = 'smem constant byte address 0x4 - core index']
  #allocation1 [shape = 'u32[72,128]{1,0:T(1,128)}', space=vmem, size = 0x9000, scoped, tag = 'internal scratch']
  #allocation2 [shape = 'f32[8,128]{1,0:T(8,128)}', space=vmem, size = 0x1000, scoped, tag = 'scratch operand']
  %s0 = inlined_call_operand.hbm [shape: f32[8,128], index: 0, kind: input, shape index: {}]
  %s1 = inlined_call_operand.hbm [shape: f32[128,128], index: 1, kind: input, shape index: {}]
  %s2 = inlined_call_operand.vmem [shape: f32[1,128], index: 2, kind: input, shape index: {}]
  %s3 = inlined_call_operand.hbm [shape: f32[128,128], index: 3, kind: input, shape index: {}]
  %s4 = inlined_call_operand.vmem [shape: f32[1,128], index: 4, kind: input, shape index: {}]
  %s5 = inlined_call_operand.hbm [shape: f32[8,128], index: 5, kind: output, shape index: {}]
  %s6 = sld [smem:[#allocation0]]
  $region42: #{tpu_custom_call.1} parent=0
    _
  %s8 = ssub.s32 1, %s6
  %s9 = scalar_select 0, %s8, %s6
  $region1: #{tpu_custom_call.1} parent=0
    #allocation3 [shape = 'u8[4096]{0}', space=vmem, size = 0x1000, scoped, tag = 'input window, operand 0, single buffered']
    #allocation4 [shape = 's32[1]{0}', space=sflag, size = 0x4, scoped, tag = 'scoped memory for tpu_custom_call.1']
    #allocation5 [shape = 's32[1]{0}', space=sflag, size = 0x4, scoped, tag = 'scoped memory for tpu_custom_call.1']
    #allocation6 [shape = 'u8[65536]{0}', space=vmem, size = 0x10000, scoped, tag = 'input window, operand 1, single buffered']
    #allocation7 [shape = 's32[1]{0}', space=sflag, size = 0x4, scoped, tag = 'scoped memory for tpu_custom_call.1']
    #allocation8 [shape = 'u8[65536]{0}', space=vmem, size = 0x10000, scoped, tag = 'input window, operand 3, single buffered']
    #allocation9 [shape = 'u8[4096]{0}', space=vmem, size = 0x1000, scoped, tag = 'output window, operand 0, single buffered']
    %10 = vsyncpa [#allocation4], 0
    %11 = vsyncpa [#allocation7], 0
    %12 = vsyncpa [#allocation5], 0
    // Predicated region
    $region2: #{tpu_custom_call.1} parent=1 // pred_check
      _
    $region3: #{tpu_custom_call.1} parent=1 // pred_check_branch
      %14 = sbr.rel (0) target = $region5
    $region4: #{tpu_custom_call.1} parent=1 // pred_region
      %16 = vsyncadd [#allocation4], 0
      %s18 = sshll.u32 %s0, 4
      %s19 = int_to_ptr.hbm [resolvable:$true] %s18
      %s20 = sshll.u32 [#allocation3], 4
      %s21 = int_to_ptr.vmem [resolvable:$true] %s20
      %23 = dma.hbm_to_vmem [thread:$0]  %s19, 128, %s21, [#allocation4]
    $region5: #{tpu_custom_call.1} parent=1 // pred_fallthru
      _
    // Predicated region
    $region6: #{tpu_custom_call.1} parent=1 // pred_check
      _
    $region7: #{tpu_custom_call.1} parent=1 // pred_check_branch
      %25 = sbr.rel (0) target = $region9
    $region8: #{tpu_custom_call.1} parent=1 // pred_region
      %27 = vsyncadd [#allocation7], 0
      %s28 = sshll.u32 %s1, 4
      %s29 = int_to_ptr.hbm [resolvable:$true] %s28
      %s30 = sshll.u32 [#allocation6], 4
      %s31 = int_to_ptr.vmem [resolvable:$true] %s30
      %36 = dma.hbm_to_vmem [thread:$0]  %s29, 2048, %s31, [#allocation7], 128, 128, 8
    $region9: #{tpu_custom_call.1} parent=1 // pred_fallthru
      _
    // Predicated region
    $region10: #{tpu_custom_call.1} parent=1 // pred_check
      _
    $region11: #{tpu_custom_call.1} parent=1 // pred_check_branch
      %38 = sbr.rel (0) target = $region13
    $region12: #{tpu_custom_call.1} parent=1 // pred_region
      _
    $region13: #{tpu_custom_call.1} parent=1 // pred_fallthru
      _
    // Predicated region
    $region14: #{tpu_custom_call.1} parent=1 // pred_check
      _
    $region15: #{tpu_custom_call.1} parent=1 // pred_check_branch
      %40 = sbr.rel (0) target = $region17
    $region16: #{tpu_custom_call.1} parent=1 // pred_region
      %42 = vsyncadd [#allocation7], 0
      %s43 = sshll.u32 %s3, 4
      %s44 = int_to_ptr.hbm [resolvable:$true] %s43
      %s45 = sshll.u32 [#allocation8], 4
      %s46 = int_to_ptr.vmem [resolvable:$true] %s45
      %51 = dma.hbm_to_vmem [thread:$0]  %s44, 2048, %s46, [#allocation7], 128, 128, 8
    $region17: #{tpu_custom_call.1} parent=1 // pred_fallthru
      _
    // Predicated region
    $region18: #{tpu_custom_call.1} parent=1 // pred_check
      _
    $region19: #{tpu_custom_call.1} parent=1 // pred_check_branch
      %53 = sbr.rel (0) target = $region21
    $region20: #{tpu_custom_call.1} parent=1 // pred_region
      _
    $region21: #{tpu_custom_call.1} parent=1 // pred_fallthru
      _
    // Predicated region
    $region22: #{tpu_custom_call.1} parent=1 // pred_check
      _
    $region23: #{tpu_custom_call.1} parent=1 // pred_check_branch
      %55 = sbr.rel (0) target = $region25
    $region24: #{tpu_custom_call.1} parent=1 // pred_region
      %57 = dma.done [#allocation4], 128
    $region25: #{tpu_custom_call.1} parent=1 // pred_fallthru
      _
    // Predicated region
    $region26: #{tpu_custom_call.1} parent=1 // pred_check
      _
    $region27: #{tpu_custom_call.1} parent=1 // pred_check_branch
      %59 = sbr.rel (0) target = $region29
    $region28: #{tpu_custom_call.1} parent=1 // pred_region
      %61 = dma.done [#allocation7], 2048
    $region29: #{tpu_custom_call.1} parent=1 // pred_fallthru
      _
    // Predicated region
    $region30: #{tpu_custom_call.1} parent=1 // pred_check
      _
    $region31: #{tpu_custom_call.1} parent=1 // pred_check_branch
      %63 = sbr.rel (0) target = $region33
    $region32: #{tpu_custom_call.1} parent=1 // pred_region
      %65 = dma.done [#allocation7], 2048
    $region33: #{tpu_custom_call.1} parent=1 // pred_fallthru
      _
    %v66 = vld [vmem:[#allocation3] sm:$0xff]
    %v67 = vld [vmem:[#allocation6] sm:$0xff]
    %v68 = vld [vmem:[#allocation6 + $0x8] sm:$0xff]
    %v69 = vld [vmem:[#allocation6 + $0x10] sm:$0xff]
    %v70 = vld [vmem:[#allocation6 + $0x18] sm:$0xff]
    %v71 = vld [vmem:[#allocation6 + $0x20] sm:$0xff]
    %v72 = vld [vmem:[#allocation6 + $0x28] sm:$0xff]
    %v73 = vld [vmem:[#allocation6 + $0x30] sm:$0xff]
    %v74 = vld [vmem:[#allocation6 + $0x38] sm:$0xff]
    %v75 = vld [vmem:[#allocation6 + $0x40] sm:$0xff]
    %v76 = vld [vmem:[#allocation6 + $0x48] sm:$0xff]
    %v77 = vld [vmem:[#allocation6 + $0x50] sm:$0xff]
    %v78 = vld [vmem:[#allocation6 + $0x58] sm:$0xff]
    %v79 = vld [vmem:[#allocation6 + $0x60] sm:$0xff]
    %v80 = vld [vmem:[#allocation6 + $0x68] sm:$0xff]
    %v81 = vld [vmem:[#allocation6 + $0x70] sm:$0xff]
    %v82 = vld [vmem:[#allocation6 + $0x78] sm:$0xff]
    %v83 = vld [vmem:[%s2] sm:$0x1]
    %v85 = vperm.slane %v83, 0
    %87 = vmatpush.msra.mxu0 %v82
    %88 = vmatpush.msra.mxu0 %v81
    %89 = vmatpush.msra.mxu0 %v80
    %90 = vmatpush.msra.mxu0 %v79
    %91 = vmatpush.msra.mxu0 %v78
    %92 = vmatpush.msra.mxu0 %v77
    %93 = vmatpush.msra.mxu0 %v76
    %94 = vmatpush.msra.mxu0 %v75
    %95 = vmatpush.msra.mxu0 %v74
    %96 = vmatpush.msra.mxu0 %v73
    %97 = vmatpush.msra.mxu0 %v72
    %98 = vmatpush.msra.mxu0 %v71
    %99 = vmatpush.msra.mxu0 %v70
    %100 = vmatpush.msra.mxu0 %v69
    %101 = vmatpush.msra.mxu0 %v68
    %102 = vmatpush.msra.mxu0 %v67
    %103 = vmatmul.f32.gmra.mxu0 %v66
    %v104 = vpop.f32.mrf.mxu0
    %v105 = vadd.f32 %v85, %v104
    %106 = vdwg.mxu0
    %v107 = vmax.f32 %v105, 0.0
    %108 = vst [vmem:[#allocation2] sm:$0xff] %v107
    %v109 = vld [vmem:[#allocation2] sm:$0xff]
    %v110 = vld [vmem:[#allocation8] sm:$0xff]
    %v111 = vld [vmem:[#allocation8 + $0x8] sm:$0xff]
    %v112 = vld [vmem:[#allocation8 + $0x10] sm:$0xff]
    %v113 = vld [vmem:[#allocation8 + $0x18] sm:$0xff]
    %v114 = vld [vmem:[#allocation8 + $0x20] sm:$0xff]
    %v115 = vld [vmem:[#allocation8 + $0x28] sm:$0xff]
    %v116 = vld [vmem:[#allocation8 + $0x30] sm:$0xff]
    %v117 = vld [vmem:[#allocation8 + $0x38] sm:$0xff]
    %v118 = vld [vmem:[#allocation8 + $0x40] sm:$0xff]
    %v119 = vld [vmem:[#allocation8 + $0x48] sm:$0xff]
    %v120 = vld [vmem:[#allocation8 + $0x50] sm:$0xff]
    %v121 = vld [vmem:[#allocation8 + $0x58] sm:$0xff]
    %v122 = vld [vmem:[#allocation8 + $0x60] sm:$0xff]
    %v123 = vld [vmem:[#allocation8 + $0x68] sm:$0xff]
    %v124 = vld [vmem:[#allocation8 + $0x70] sm:$0xff]
    %v125 = vld [vmem:[#allocation8 + $0x78] sm:$0xff]
    %v126 = vld [vmem:[%s4] sm:$0x1]
    %v128 = vperm.slane %v126, 0
    %130 = vmatpush.msra.mxu0 %v125
    %131 = vmatpush.msra.mxu0 %v124
    %132 = vmatpush.msra.mxu0 %v123
    %133 = vmatpush.msra.mxu0 %v122
    %134 = vmatpush.msra.mxu0 %v121
    %135 = vmatpush.msra.mxu0 %v120
    %136 = vmatpush.msra.mxu0 %v119
    %137 = vmatpush.msra.mxu0 %v118
    %138 = vmatpush.msra.mxu0 %v117
    %139 = vmatpush.msra.mxu0 %v116
    %140 = vmatpush.msra.mxu0 %v115
    %141 = vmatpush.msra.mxu0 %v114
    %142 = vmatpush.msra.mxu0 %v113
    %143 = vmatpush.msra.mxu0 %v112
    %144 = vmatpush.msra.mxu0 %v111
    %145 = vmatpush.msra.mxu0 %v110
    %146 = vmatmul.f32.gmra.mxu0 %v109
    %v147 = vpop.f32.mrf.mxu0
    %v148 = vadd.f32 %v128, %v147
    %149 = vdwg.mxu0
    %150 = vst [vmem:[#allocation9] sm:$0xff] %v148
    // Predicated region
    $region34: #{tpu_custom_call.1} parent=1 // pred_check
      _
    $region35: #{tpu_custom_call.1} parent=1 // pred_check_branch
      %152 = sbr.rel (0) target = $region37
    $region36: #{tpu_custom_call.1} parent=1 // pred_region
      %154 = vsyncadd [#allocation5], 0
      %s156 = sshll.u32 [#allocation9], 4
      %s157 = int_to_ptr.vmem [resolvable:$true] %s156
      %s158 = sshll.u32 %s5, 4
      %s159 = int_to_ptr.hbm [resolvable:$true] %s158
      %161 = dma.vmem_to_hbm [thread:$0]  %s157, 128, %s159, [#allocation5]
    $region37: #{tpu_custom_call.1} parent=1 // pred_fallthru
      _
    // Predicated region
    $region38: #{tpu_custom_call.1} parent=1 // pred_check
      _
    $region39: #{tpu_custom_call.1} parent=1 // pred_check_branch
      %163 = sbr.rel (0) target = $region41
    $region40: #{tpu_custom_call.1} parent=1 // pred_region
      %165 = dma.done [#allocation5], 128
    $region41: #{tpu_custom_call.1} parent=1 // pred_fallthru
      _
    %166 = vsyncpa [#allocation4], 1
    %167 = vsyncpa [#allocation7], 1
    %168 = vsyncpa [#allocation5], 1

</llo_original>
